<compile_context>
chip_gen: v6e
topology: v6e:2x2x1
jax: 0.10.0
libtpu: 0.0.40
codegen_flags: <defaults>
</compile_context>

<pallas_src>
import functools

import jax
import jax.numpy as jnp
from jax.experimental import pallas as pl
from jax.experimental.pallas import tpu as pltpu


def _ceil8(x):
    return ((x + 7) // 8) * 8


def _pad_rows(a, rows):
    if a.shape[0] == rows:
        return a
    return jnp.pad(a, ((0, rows - a.shape[0]),) + ((0, 0),) * (a.ndim - 1))


# ----------------------------------------------------------------------------
# pltpu.roll sign probe (one tiny kernel, cached)
# ----------------------------------------------------------------------------

@functools.lru_cache(maxsize=None)
def _roll_sign():
    """Returns s so that pltpu.roll(x, (s*d) % n, axis=-1)[..., r] == x[..., r+d]."""
    def k(x_ref, o_ref):
        o_ref[...] = pltpu.roll(x_ref[...], 1, axis=1)

    x = jax.lax.broadcasted_iota(jnp.float32, (8, 128), 1)
    y = pl.pallas_call(k, out_shape=jax.ShapeDtypeStruct((8, 128), jnp.float32))(x)
    # jnp.roll convention: y[0,0] == 127  =>  roll(x, -d) gives x[r+d]
    return -1 if int(y[0, 0]) == 127 else 1


# ----------------------------------------------------------------------------
# Fused fully-connected kernel (bf16 MXU, f32 accumulate)
# ----------------------------------------------------------------------------

def fc_fused(z, w, b):
    """z (B, nz) @ w (nz, F) + b (1, F)."""
    B = z.shape[0]
    Bp = _ceil8(B)
    zp = _pad_rows(z, Bp)
    F = w.shape[1]

    def kernel(z_ref, w_ref, b_ref, o_ref):
        o_ref[...] = jnp.dot(z_ref[...].astype(jnp.bfloat16), w_ref[...],
                             preferred_element_type=jnp.float32) + b_ref[...]

    out = pl.pallas_call(
        kernel, out_shape=jax.ShapeDtypeStruct((Bp, F), jnp.float32),
    )(zp, w, b)
    return out[:B]


# ----------------------------------------------------------------------------
# Fused 3x3 conv (+BN / +bias) (+shortcut/residual) (+relu/tanh)
# ----------------------------------------------------------------------------

def _im2col_cr(x_cr, N, H, W):
    """Patches for the (rare) tiny-layer fallback. (Cp, R) -> (9*Cp, R)."""
    Cp = x_cr.shape[0]
    xs = x_cr.reshape(Cp, N, H, W)
    xp = jnp.pad(xs, ((0, 0), (0, 0), (1, 1), (1, 1)))
    taps = [xp[:, :, ky:ky + H, kx:kx + W] for ky in range(3) for kx in range(3)]
    return jnp.concatenate(taps, axis=0).reshape(9 * Cp, N * H * W)


def conv3x3_fused(x, w9, *, N, H, W,
                  gamma=None, beta=None, bias=None,
                  res=None, w_sc=None, b_sc=None,
                  act="relu", eps=1e-5):
    """3x3 conv (stride 1, pad 1) on the (Cp, R=N*H*W) layout, fully fused.

    Optional fusions: training-mode BatchNorm (gamma/beta), bias (when no BN),
    residual add with optional 1x1 shortcut conv (w_sc/b_sc), relu / tanh.
    """
    Cin_p, R = x.shape
    assert R == N * H * W
    assert w9.shape[2] == Cin_p
    Cout_p = w9.shape[1]
    has_bn = gamma is not None
    has_res = res is not None
    has_sc = w_sc is not None
    use_rolls = (R % 128 == 0)          # lane-roll tap generation path
    sign = _roll_sign() if use_rolls else 1
    inv_R = 1.0 / R
    pow2 = ((W & (W - 1)) == 0) and ((H & (H - 1)) == 0)
    log2w = W.bit_length() - 1

    if use_rolls:
        conv_in = x                                              # (Cin_p, R) f32
        w_in = w9                                                # (9, Cout_p, Cin_p) bf16
    else:
        # tiny first layer only (R not a multiple of the 128-lane tile)
        conv_in = _im2col_cr(x, N, H, W).astype(jnp.bfloat16)    # (9*Cin_p, R)
        w_in = jnp.transpose(w9, (1, 0, 2)).reshape(Cout_p, 9 * Cin_p)

    args = [conv_in, w_in]
    if has_bn:
        args += [gamma, beta]
    if bias is not None:
        args += [bias]
    if has_res:
        args += [res]
    if has_sc:
        args += [w_sc, b_sc]

    def kernel(*refs):
        it = iter(refs)
        x_ref = next(it)
        w_ref = next(it)
        g_ref = next(it) if has_bn else None
        bta_ref = next(it) if has_bn else None
        bias_ref = next(it) if bias is not None else None
        res_ref = next(it) if has_res else None
        wsc_ref = next(it) if has_sc else None
        bsc_ref = next(it) if has_sc else None
        o_ref = next(it)

        if use_rolls:
            xb = x_ref[...].astype(jnp.bfloat16)                 # (Cin_p, R)
            col = jax.lax.broadcasted_iota(jnp.int32, (1, R), 1)
            if pow2:
                w_idx = col & (W - 1)
                h_idx = (col >> log2w) & (H - 1)
            else:
                w_idx = col % W
                h_idx = (col // W) % H
            acc = jnp.zeros((Cout_p, R), jnp.float32)
            for ky in range(3):
                for kx in range(3):
                    dy, dx = ky - 1, kx - 1
                    shift = dy * W + dx
                    if shift == 0:
                        tap = xb
                    else:
                        tap = pltpu.roll(xb, (sign * shift) % R, axis=1)
                    conds = []
                    if dx == -1:
                        conds.append(w_idx >= 1)
                    if dx == 1:
                        conds.append(w_idx < W - 1)
                    if dy == -1:
                        conds.append(h_idx >= 1)
                    if dy == 1:
                        conds.append(h_idx < H - 1)
                    if conds:
                        valid = functools.reduce(lambda a, b: a & b, conds)
                        tap = tap * valid.astype(jnp.bfloat16)
                    acc = acc + jnp.dot(w_ref[ky * 3 + kx], tap,
                                        preferred_element_type=jnp.float32)
        else:
            acc = jnp.dot(w_ref[...], x_ref[...],
                          preferred_element_type=jnp.float32)

        if has_bn:
            # training-mode BatchNorm over all R = N*H*W positions
            # (two-pass, centered variance; pre-BN conv bias cancels exactly)
            mean = jnp.sum(acc, axis=1, keepdims=True) * inv_R
            cen = acc - mean
            var = jnp.sum(cen * cen, axis=1, keepdims=True) * inv_R
            y = cen * (g_ref[...] * jax.lax.rsqrt(var + eps)) + bta_ref[...]
        else:
            y = acc
            if bias_ref is not None:
                y = y + bias_ref[...]

        if has_res:
            if has_sc:
                r = jnp.dot(wsc_ref[...], res_ref[...].astype(jnp.bfloat16),
                            preferred_element_type=jnp.float32) + bsc_ref[...]
            else:
                r = res_ref[...]
            y = y + r

        if act == "relu":
            y = jnp.maximum(y, 0.0)
        elif act == "tanh":
            y = jnp.tanh(y)
        o_ref[...] = y

    return pl.pallas_call(
        kernel,
        out_shape=jax.ShapeDtypeStruct((Cout_p, R), jnp.float32),
        compiler_params=pltpu.CompilerParams(
            vmem_limit_bytes=32 * 1024 * 1024),
    )(*args)


# ----------------------------------------------------------------------------
# Fused self-attention (batched via a parallel grid axis)
# ----------------------------------------------------------------------------

def attention_fused(x, p, *, N, HW):
    """SelfAttention on the (Cp, R=N*HW) layout: one kernel, grid over batch."""
    Cp, R = x.shape
    assert R == N * HW
    C8p = p["wq"].shape[0]

    def kernel(x_ref, wq_ref, bq_ref, wk_ref, bk_ref, wv_ref, bv_ref,
               gam_ref, o_ref):
        xf = x_ref[...]                                          # (Cp, HW) f32
        xb = xf.astype(jnp.bfloat16)
        q = jnp.dot(wq_ref[...], xb, preferred_element_type=jnp.float32) + bq_ref[...]
        k = jnp.dot(wk_ref[...], xb, preferred_element_type=jnp.float32) + bk_ref[...]
        v = jnp.dot(wv_ref[...], xb, preferred_element_type=jnp.float32) + bv_ref[...]
        # scores[i, j] = sum_d q[d, i] * k[d, j]
        s = jnp.dot(jnp.transpose(q), k, preferred_element_type=jnp.float32)
        m = jnp.max(s, axis=-1, keepdims=True)
        e = jnp.exp(s - m)
        a = e / jnp.sum(e, axis=-1, keepdims=True)
        # out[c, i] = sum_j v[c, j] * a[i, j]
        oT = jnp.dot(a, jnp.transpose(v), preferred_element_type=jnp.float32)
        out = jnp.transpose(oT)                                  # (Cp, HW)
        o_ref[...] = gam_ref[0, 0] * out + xf

    return pl.pallas_call(
        kernel,
        out_shape=jax.ShapeDtypeStruct((Cp, R), jnp.float32),
        grid=(N,),
        in_specs=[
            pl.BlockSpec((Cp, HW), lambda b: (0, b)),
            pl.BlockSpec((C8p, Cp), lambda b: (0, 0)),
            pl.BlockSpec((C8p, 1), lambda b: (0, 0)),
            pl.BlockSpec((C8p, Cp), lambda b: (0, 0)),
            pl.BlockSpec((C8p, 1), lambda b: (0, 0)),
            pl.BlockSpec((Cp, Cp), lambda b: (0, 0)),
            pl.BlockSpec((Cp, 1), lambda b: (0, 0)),
            pl.BlockSpec(memory_space=pltpu.MemorySpace.SMEM),
        ],
        out_specs=pl.BlockSpec((Cp, HW), lambda b: (0, b)),
        compiler_params=pltpu.CompilerParams(
            dimension_semantics=("parallel",),
            vmem_limit_bytes=32 * 1024 * 1024),
    )(x, p["wq"], p["bq"], p["wk"], p["bk"], p["wv"], p["bv"], p["gamma"])


# ----------------------------------------------------------------------------
# XLA glue: 2x nearest upsample on the (Cp, R) layout
# ----------------------------------------------------------------------------

def upsample2x_cr(x, N, H, W):
    Cp = x.shape[0]
    v = x.reshape(Cp, N, H, 1, W, 1)
    v = jnp.broadcast_to(v, (Cp, N, H, 2, W, 2))
    return v.reshape(Cp, N * (2 * H) * (2 * W))


# ----------------------------------------------------------------------------
# Parameters: natural (f32) init + packed/padded bf16 kernel layouts
# ----------------------------------------------------------------------------

def init_params(key, nz=16, ngf=4, nc=3):
    keys = iter(jax.random.split(key, 128))

    def nrm(shape, std=0.02):
        return std * jax.random.normal(next(keys), shape, jnp.float32)

    C0 = ngf * 16
    F = 4 * 4 * C0
    p = {"fc_w": nrm((nz, F)), "fc_b": nrm((F,), 0.01)}

    chans = [C0, ngf * 8, ngf * 4, ngf * 2, ngf, ngf]
    blocks = []
    for i in range(5):
        cin, cout = chans[i], chans[i + 1]
        blk = {
            # conv1/conv2 biases omitted: bias directly followed by
            # training-mode BatchNorm cancels exactly.
            "conv1_w": nrm((3, 3, cin, cout)),
            "conv2_w": nrm((3, 3, cout, cout)),
            "bn1_g": 1.0 + nrm((cout,)), "bn1_b": nrm((cout,), 0.1),
            "bn2_g": 1.0 + nrm((cout,)), "bn2_b": nrm((cout,), 0.1),
        }
        if cin != cout:
            blk["sc_w"] = nrm((cin, cout))
            blk["sc_b"] = nrm((cout,), 0.01)
        blocks.append(blk)
    p["blocks"] = blocks

    ca = ngf * 2
    c8 = max(ca // 8, 1)
    p["attn"] = {
        "q_w": nrm((ca, c8)), "q_b": nrm((c8,), 0.01),
        "k_w": nrm((ca, c8)), "k_b": nrm((c8,), 0.01),
        "v_w": nrm((ca, ca)), "v_b": nrm((ca,), 0.01),
        # PyTorch initializes gamma=0 (attention disabled); nonzero here so the
        # attention path is actually exercised and verified.
        "gamma": jnp.asarray([0.3], jnp.float32),
    }
    p["final_w"] = nrm((3, 3, ngf, nc))
    p["final_b"] = nrm((nc,), 0.01)
    return p


def _col_param(v, rows):
    return _pad_rows(v.reshape(-1, 1).astype(jnp.float32), rows)


def _pack_conv3x3(w, cin_p, cout_p):      # (3,3,Cin,Cout) -> (9,Cout_p,Cin_p) bf16
    k = jnp.transpose(w, (0, 1, 3, 2)).reshape(9, w.shape[3], w.shape[2])
    k = jnp.pad(k, ((0, 0), (0, cout_p - k.shape[1]), (0, cin_p - k.shape[2])))
    return k.astype(jnp.bfloat16)


def _pack_conv1x1(w, cin_p, cout_p):      # (Cin,Cout) -> (Cout_p,Cin_p) bf16
    k = jnp.transpose(w)
    k = jnp.pad(k, ((0, cout_p - k.shape[0]), (0, cin_p - k.shape[1])))
    return k.astype(jnp.bfloat16)


def prepare_kernel_params(p, ngf, nc):
    kp = {"fc_w": p["fc_w"].astype(jnp.bfloat16),
          "fc_b": p["fc_b"].reshape(1, -1).astype(jnp.float32)}
    chans = [ngf * 16, ngf * 8, ngf * 4, ngf * 2, ngf, ngf]
    kblocks = []
    for i, blk in enumerate(p["blocks"]):
        cin, cout = chans[i], chans[i + 1]
        cin_p, cout_p = _ceil8(cin), _ceil8(cout)
        kb = {
            "w1": _pack_conv3x3(blk["conv1_w"], cin_p, cout_p),
            "w2": _pack_conv3x3(blk["conv2_w"], cout_p, cout_p),
            "g1": _col_param(blk["bn1_g"], cout_p),
            "b1": _col_param(blk["bn1_b"], cout_p),
            "g2": _col_param(blk["bn2_g"], cout_p),
            "b2": _col_param(blk["bn2_b"], cout_p),
        }
        if "sc_w" in blk:
            kb["wsc"] = _pack_conv1x1(blk["sc_w"], cin_p, cout_p)
            kb["bsc"] = _col_param(blk["sc_b"], cout_p)
        kblocks.append(kb)
    kp["blocks"] = kblocks

    ca = ngf * 2
    c8 = max(ca // 8, 1)
    ca_p, c8_p = _ceil8(ca), _ceil8(c8)
    a = p["attn"]
    kp["attn"] = {
        "wq": _pack_conv1x1(a["q_w"], ca_p, c8_p), "bq": _col_param(a["q_b"], c8_p),
        "wk": _pack_conv1x1(a["k_w"], ca_p, c8_p), "bk": _col_param(a["k_b"], c8_p),
        "wv": _pack_conv1x1(a["v_w"], ca_p, ca_p), "bv": _col_param(a["v_b"], ca_p),
        "gamma": a["gamma"].reshape(1, 1).astype(jnp.float32),
    }
    kp["final_w"] = _pack_conv3x3(p["final_w"], _ceil8(ngf), _ceil8(nc))
    kp["final_b"] = _col_param(p["final_b"], _ceil8(nc))
    return kp


# ----------------------------------------------------------------------------
# Pallas forward pass
# ----------------------------------------------------------------------------

def improved_generator_forward(z, kp, *, ngf, nc):
    B = z.shape[0]
    C0 = ngf * 16

    x = fc_fused(z, kp["fc_w"], kp["fc_b"])                       # (B, 4*4*C0)
    # -> channel-major flattened layout (Cp, R = N*H*W)
    x = x.reshape(B, C0, 4, 4).transpose(1, 0, 2, 3).reshape(C0, B * 16)
    x = _pad_rows(x, _ceil8(C0))
    H = W = 4

    for i, blk in enumerate(kp["blocks"]):
        h = conv3x3_fused(x, blk["w1"], N=B, H=H, W=W,
                          gamma=blk["g1"], beta=blk["b1"], act="relu")
        h_up = upsample2x_cr(h, B, H, W)
        x_up = upsample2x_cr(x, B, H, W)
        H, W = 2 * H, 2 * W
        x = conv3x3_fused(h_up, blk["w2"], N=B, H=H, W=W,
                          gamma=blk["g2"], beta=blk["b2"],
                          res=x_up, w_sc=blk.get("wsc"), b_sc=blk.get("bsc"),
                          act="relu")
        if i == 2:
            x = attention_fused(x, kp["attn"], N=B, HW=H * W)

    y = conv3x3_fused(x, kp["final_w"], N=B, H=H, W=W,
                      bias=kp["final_b"], act="tanh")
    y = y[:nc].reshape(nc, B, H, W).transpose(1, 0, 2, 3)        # -> NCHW
    return y


# ----------------------------------------------------------------------------
# Pure-JAX (XLA, f32) reference of the same forward, for verification
# ----------------------------------------------------------------------------

def _ref_conv3x3(x, w, b=None):
    y = jax.lax.conv_general_dilated(
        x, w, window_strides=(1, 1), padding="SAME",
        dimension_numbers=("NHWC", "HWIO", "NHWC"))
    return y if b is None else y + b


def _ref_bn(x, g, b, eps=1e-5):
    mean = jnp.mean(x, axis=(0, 1, 2), keepdims=True)
    var = jnp.mean(jnp.square(x - mean), axis=(0, 1, 2), keepdims=True)
    return (x - mean) * jax.lax.rsqrt(var + eps) * g + b


def _ref_up2(x):
    return jnp.repeat(jnp.repeat(x, 2, axis=1), 2, axis=2)


def reference_forward(z, p, *, ngf, nc):
    B = z.shape[0]
    C0 = ngf * 16
    x = z @ p["fc_w"] + p["fc_b"]
    x = x.reshape(B, C0, 4, 4).transpose(0, 2, 3, 1)             # NHWC
    for i, blk in enumerate(p["blocks"]):
        h = jax.nn.relu(_ref_bn(_ref_conv3x3(x, blk["conv1_w"]),
                                blk["bn1_g"], blk["bn1_b"]))
        h = _ref_up2(h)
        h = _ref_bn(_ref_conv3x3(h, blk["conv2_w"]), blk["bn2_g"], blk["bn2_b"])
        r = _ref_up2(x)
        if "sc_w" in blk:
            r = jnp.einsum("nhwc,cd->nhwd", r, blk["sc_w"]) + blk["sc_b"]
        x = jax.nn.relu(h + r)
        if i == 2:
            a = p["attn"]
            N, Hh, Ww, C = x.shape
            xf = x.reshape(N, Hh * Ww, C)
            q = xf @ a["q_w"] + a["q_b"]
            k = xf @ a["k_w"] + a["k_b"]
            v = xf @ a["v_w"] + a["v_b"]
            s = jnp.einsum("bid,bjd->bij", q, k)
            att = jax.nn.softmax(s, axis=-1)
            o = jnp.einsum("bij,bjc->bic", att, v)
            x = (a["gamma"][0] * o + xf).reshape(N, Hh, Ww, C)
    y = jnp.tanh(_ref_conv3x3(x, p["final_w"], p["final_b"]))
    return y.transpose(0, 3, 1, 2)                               # NCHW


# ----------------------------------------------------------------------------

if __name__ == "__main__":
    nz, ngf, nc, batch = 16, 4, 3, 2
    key = jax.random.PRNGKey(0)
    pkey, zkey = jax.random.split(key)

    params = init_params(pkey, nz=nz, ngf=ngf, nc=nc)
    kparams = prepare_kernel_params(params, ngf, nc)
    z = jax.random.normal(zkey, (batch, nz), dtype=jnp.float32)

    _roll_sign()  # warm the roll-convention probe outside any trace

    fwd = jax.jit(functools.partial(improved_generator_forward, ngf=ngf, nc=nc))
    out = jax.block_until_ready(fwd(z, kparams))

    assert out.shape == (batch, nc, 128, 128), out.shape
    assert bool(jnp.all(jnp.isfinite(out)))
    assert bool(jnp.all(jnp.abs(out) <= 1.0 + 1e-6))             # tanh range

    # Cross-check against a pure-JAX f32 reference of the same forward; the
    # tolerance covers the bf16 MXU operands used inside the Pallas kernels.
    ref_fn = jax.jit(functools.partial(reference_forward, ngf=ngf, nc=nc))
    ref = jax.block_until_ready(ref_fn(z, params))
    err = float(jnp.max(jnp.abs(out - ref)))
    assert err < 0.15, f"max |pallas - reference| = {err}"

    print("KERNEL_OK")
</pallas_src>

<mosaic_0001>
module attributes {stable_mosaic.version = 11 : i64} {
  func.func @k(%arg0: memref<8x128xf32, #tpu.memory_space<vmem>>, %arg1: memref<8x128xf32, #tpu.memory_space<vmem>>) attributes {dimension_semantics = [], scalar_prefetch = 0 : i64, scratch_operands = 0 : i64, tpu.core_type = #tpu.core_type<tc>} {
    %c0 = arith.constant 0 : index
    %c0_0 = arith.constant 0 : index
    %0 = vector.load %arg0[%c0, %c0_0] : memref<8x128xf32, #tpu.memory_space<vmem>>, vector<8x128xf32>
    %c1_i32 = arith.constant 1 : i32
    %1 = tpu.dynamic_rotate %0 by %c1_i32 dim 1 : vector<8x128xf32>, i32 -> vector<8x128xf32>
    %c0_1 = arith.constant 0 : index
    %c0_2 = arith.constant 0 : index
    %2 = vector.load %arg1[%c0_1, %c0_2] : memref<8x128xf32, #tpu.memory_space<vmem>>, vector<8x128xf32>
    tpu.vector_store %arg1[%c0_1, %c0_2], %1 {strides = array<i32>} : memref<8x128xf32, #tpu.memory_space<vmem>>, vector<8x128xf32>,
    return
  }
}

</mosaic_0001>

<llo_original>
// kernel: tpu_custom_call.1
$region0: #{tpu_custom_call.1}
  #allocation0 [shape = 'u32[]', space=smem, size = 0x4, offset = 0x4, fixed_abs, tag = 'smem constant byte address 0x4 - core index']
  #allocation1 [shape = 'u32[144,128]{1,0:T(1,128)}', space=vmem, size = 0x12000, scoped, tag = 'internal scratch']
  %s0 = inlined_call_operand.hbm [shape: f32[8,128], index: 0, kind: input, shape index: {}]
  %s1 = inlined_call_operand.hbm [shape: f32[8,128], index: 1, kind: output, shape index: {}]
  %s2 = sld [smem:[#allocation0]]
  $region18: #{tpu_custom_call.1} parent=0
    _
  %s4 = ssub.s32 1, %s2
  %s5 = scalar_select 0, %s4, %s2
  $region1: #{tpu_custom_call.1} parent=0
    #allocation2 [shape = 'u8[4096]{0}', space=vmem, size = 0x1000, scoped, tag = 'input window, operand 0, single buffered']
    #allocation3 [shape = 's32[1]{0}', space=sflag, size = 0x4, scoped, tag = 'scoped memory for tpu_custom_call.1']
    #allocation4 [shape = 's32[1]{0}', space=sflag, size = 0x4, scoped, tag = 'scoped memory for tpu_custom_call.1']
    #allocation5 [shape = 'u8[4096]{0}', space=vmem, size = 0x1000, scoped, tag = 'output window, operand 0, single buffered']
    %6 = vsyncpa [#allocation3], 0
    %7 = vsyncpa [#allocation4], 0
    // Predicated region
    $region2: #{tpu_custom_call.1} parent=1 // pred_check
      _
    $region3: #{tpu_custom_call.1} parent=1 // pred_check_branch
      %9 = sbr.rel (0) target = $region5
    $region4: #{tpu_custom_call.1} parent=1 // pred_region
      %s11 = ssub.s32 128, 128
      %12 = vsyncadd [#allocation3], %s11
      %s14 = sshll.u32 [#allocation2], 4
      %s15 = int_to_ptr.vmem [resolvable:$true] %s14
      %17 = dma.hbm_to_vmem [thread:$0]  %s0, 128, %s15, [#allocation3]
    $region5: #{tpu_custom_call.1} parent=1 // pred_fallthru
      _
    // Predicated region
    $region6: #{tpu_custom_call.1} parent=1 // pred_check
      _
    $region7: #{tpu_custom_call.1} parent=1 // pred_check_branch
      %19 = sbr.rel (0) target = $region9
    $region8: #{tpu_custom_call.1} parent=1 // pred_region
      %20 = dma.done [#allocation3], 128
    $region9: #{tpu_custom_call.1} parent=1 // pred_fallthru
      _
    %v21 = vld [vmem:[#allocation2] sm:$0xff]
    %22 = vrot.lane.b32.xlu0 %v21, 1
    %v23 = vpop.permute.xlu0 %22
    %24 = vst [vmem:[#allocation5] sm:$0xff] %v23
    // Predicated region
    $region10: #{tpu_custom_call.1} parent=1 // pred_check
      _
    $region11: #{tpu_custom_call.1} parent=1 // pred_check_branch
      %26 = sbr.rel (0) target = $region13
    $region12: #{tpu_custom_call.1} parent=1 // pred_region
      %s28 = ssub.s32 128, 128
      %29 = vsyncadd [#allocation4], %s28
      %s31 = sshll.u32 [#allocation5], 4
      %s32 = int_to_ptr.vmem [resolvable:$true] %s31
      %34 = dma.vmem_to_hbm [thread:$0]  %s32, 128, %s1, [#allocation4]
    $region13: #{tpu_custom_call.1} parent=1 // pred_fallthru
      _
    // Predicated region
    $region14: #{tpu_custom_call.1} parent=1 // pred_check
      _
    $region15: #{tpu_custom_call.1} parent=1 // pred_check_branch
      %36 = sbr.rel (0) target = $region17
    $region16: #{tpu_custom_call.1} parent=1 // pred_region
      %37 = dma.done [#allocation4], 128
    $region17: #{tpu_custom_call.1} parent=1 // pred_fallthru
      _
    %38 = vsyncpa [#allocation3], 1
    %39 = vsyncpa [#allocation4], 1

</llo_original>
